<compile_context>
chip_gen: v5e
topology: v5e:2x2
jax: 0.10.0
libtpu: 0.0.40
codegen_flags: <defaults>
</compile_context>

<pallas_src>
import jax
import jax.numpy as jnp
import numpy as np
from jax.experimental import pallas as pl
from jax.experimental.pallas import tpu as pltpu


def _score_jk_kernel(src_ref, w1bd_ref, b1_ref, w2bd_ref, b2_ref, e_ref, s_ref,
                     a_ref, out_ref):
    src = src_ref[...]                                      # [TN, L*D], lane-dense

    # MLP layer 1 for all L layers at once (block-diagonal W1, K = L*D).
    h = jnp.dot(src, w1bd_ref[...], preferred_element_type=jnp.float32)
    h = jnp.maximum(h + b1_ref[...], 0.0)                   # [TN, L*D] f32

    # MLP layer 2 (Linear(D, 1) per layer) as one block matmul -> [TN, L].
    logits = jnp.dot(h, w2bd_ref[...], preferred_element_type=jnp.float32)
    logits = logits + b2_ref[0]                             # scalar bias from SMEM

    # Softmax over the layer axis (dim=1 of the stacked PyTorch tensor).
    m = jnp.max(logits, axis=-1, keepdims=True)
    e = jnp.exp(logits - m)
    denom = jnp.sum(e, axis=-1, keepdims=True)
    a = e * pl.reciprocal(denom, approx=False)              # [TN, L] f32

    a_ref[...] = a.astype(a_ref.dtype)                      # 2-D, no width-1 store

    # Weighted sum over layers, kept lane-dense:
    #   a_expand[:, l*D + d] = a[:, l]               (selector E: [L, L*D])
    #   out[:, d] = sum_l a[:, l] * src[:, l*D + d]  (selector S: [L*D, D])
    a_expand = jnp.dot(a, e_ref[...], preferred_element_type=jnp.float32)
    prod = a_expand * src.astype(jnp.float32)
    out = jnp.dot(prod, s_ref[...], preferred_element_type=jnp.float32)
    out_ref[...] = out.astype(out_ref.dtype)


def _pick_tile(n):
    """Node tile + VMEM limit.

    Ensures >= 2 grid steps (so the 'parallel' axis shards across v7x's two
    TensorCores) and caps the tile by VMEM generation: 2048 on small-VMEM /
    unknown chips (v7x: 64 MiB phys, 32 MiB scoped default), 4096 with a
    64 MiB scoped-VMEM override on 128-MiB chips (v5e/v6e).
    """
    try:
        info = pltpu.get_tpu_info()
        big_vmem = getattr(info, "vmem_capacity_bytes", 0) >= (100 << 20)
    except Exception:
        big_vmem = False
    cap = 4096 if big_vmem else 2048
    vmem_limit = (64 << 20) if big_vmem else None
    half = -(-n // 2)                       # cdiv(n, 2) -> at least 2 grid steps
    half = ((half + 7) // 8) * 8            # sublane-aligned
    tile = max(8, min(cap, half))
    return tile, vmem_limit


def make_score_jk_params(w1, b1, w2, b2, num_layers, *, compute_dtype=jnp.bfloat16):
    """Hoisted per-weight-set preprocessing (call once, reuse across forwards).

    w1: [D, D] = Linear(D, D).weight.T    b1: [D]
    w2: [D, 1] = Linear(D, 1).weight.T    b2: scalar
    compute_dtype: dtype fed to the MXU for src / block-diag W1 (bf16 halves
                   the dominant HBM read stream; pass jnp.float32 for exact).
    """
    D = w1.shape[0]
    L = num_layers
    eye_l = jnp.eye(L, dtype=jnp.float32)
    w1_bd = jnp.kron(eye_l, w1.astype(jnp.float32)).astype(compute_dtype)       # [LD, LD]
    b1_t = jnp.tile(b1.astype(jnp.float32).reshape(1, D), (1, L))               # [1, LD]
    w2_bd = jnp.kron(eye_l, w2.astype(jnp.float32).reshape(D, 1))               # [LD, L]
    b2_s = jnp.reshape(b2, (1,)).astype(jnp.float32)                            # SMEM scalar
    e_sel = jnp.kron(eye_l, jnp.ones((1, D), jnp.float32))                      # [L, LD]
    s_sel = jnp.kron(jnp.ones((L, 1), jnp.float32), jnp.eye(D, dtype=jnp.float32))  # [LD, D]
    return dict(w1_bd=w1_bd, b1=b1_t, w2_bd=w2_bd, b2=b2_s,
                e_sel=e_sel, s_sel=s_sel, L=L, D=D)


def score_jk(src, params, *, tile_n=None):
    """ScoreJK forward.

    src:    [N, L, D] float32 (stacked JK layer features)
    params: output of make_score_jk_params
    Returns (a [N, L, 1], out [N, D]) in src.dtype.
    """
    N, L, D = src.shape
    assert L == params["L"] and D == params["D"]
    LD = L * D
    out_dtype = src.dtype
    compute_dtype = params["w1_bd"].dtype

    src2d = src.reshape(N, LD).astype(compute_dtype)         # free, lane-dense

    if tile_n is None:
        tile_n, vmem_limit = _pick_tile(N)
    else:
        vmem_limit = None
    grid = (pl.cdiv(N, tile_n),)   # ragged last block is fine: rows independent

    a2d, out = pl.pallas_call(
        _score_jk_kernel,
        out_shape=(
            jax.ShapeDtypeStruct((N, L), out_dtype),
            jax.ShapeDtypeStruct((N, D), out_dtype),
        ),
        grid_spec=pltpu.PrefetchScalarGridSpec(
            num_scalar_prefetch=0,
            grid=grid,
            in_specs=[
                pl.BlockSpec((tile_n, LD), lambda i: (i, 0)),       # src (lane-dense)
                pl.BlockSpec((LD, LD), lambda i: (0, 0)),           # block-diag W1
                pl.BlockSpec((1, LD), lambda i: (0, 0)),            # tiled b1
                pl.BlockSpec((LD, L), lambda i: (0, 0)),            # block W2
                pl.BlockSpec(memory_space=pltpu.MemorySpace.SMEM),  # b2 scalar
                pl.BlockSpec((L, LD), lambda i: (0, 0)),            # expand selector E
                pl.BlockSpec((LD, D), lambda i: (0, 0)),            # reduce selector S
            ],
            out_specs=[
                pl.BlockSpec((tile_n, L), lambda i: (i, 0)),        # a   [N, L]
                pl.BlockSpec((tile_n, D), lambda i: (i, 0)),        # out [N, D]
            ],
        ),
        compiler_params=pltpu.CompilerParams(
            dimension_semantics=("parallel",),
            vmem_limit_bytes=vmem_limit,
        ),
    )(src2d, params["w1_bd"], params["b1"], params["w2_bd"], params["b2"],
      params["e_sel"], params["s_sel"])

    return a2d[:, :, None], out                               # match PyTorch [N, L, 1]


def xavier_uniform(key, shape, fan_in, fan_out, dtype=jnp.float32):
    bound = np.sqrt(6.0 / (fan_in + fan_out))
    return jax.random.uniform(key, shape, dtype=dtype, minval=-bound, maxval=bound)


def reference(src, w1, b1, w2, b2):
    # Pure-JAX reference mirroring the PyTorch ScoreJK forward.
    h = jnp.maximum(src @ w1 + b1, 0.0)             # [N, L, D]
    logits = h @ w2 + b2                            # [N, L, 1]
    a = jax.nn.softmax(logits, axis=1)              # softmax over layer axis
    out = jnp.sum(a * src, axis=1)                  # [N, D]
    return a, out


if __name__ == "__main__":
    key = jax.random.PRNGKey(0)
    k_src, k_w1, k_w2 = jax.random.split(key, 3)

    N, L, D = 128, 4, 32   # nodes, JK layers, hidden dim (in_dim)

    # src is a list of L tensors [N, D]; stack(dim=1) -> [N, L, D]
    src_list = [
        jax.random.normal(jax.random.fold_in(k_src, l), (N, D), dtype=jnp.float32)
        for l in range(L)
    ]
    src = jnp.stack(src_list, axis=1)               # [N, L, D]

    # Deterministic parameter init (xavier_uniform weights, zero biases),
    # stored already transposed for x @ W.
    w1 = xavier_uniform(k_w1, (D, D), fan_in=D, fan_out=D)   # Linear(D, D).weight.T
    b1 = jnp.zeros((D,), dtype=jnp.float32)
    w2 = xavier_uniform(k_w2, (D, 1), fan_in=D, fan_out=1)   # Linear(D, 1).weight.T
    b2 = jnp.zeros((), dtype=jnp.float32)

    # --- 1) f32 compute path: exact semantics of the PyTorch module -----------
    params_f32 = make_score_jk_params(w1, b1, w2, b2, L, compute_dtype=jnp.float32)
    a32, out32 = score_jk(src, params_f32)
    jax.block_until_ready((a32, out32))
    a_ref, out_ref = reference(src, w1, b1, w2, b2)
    np.testing.assert_allclose(np.asarray(a32), np.asarray(a_ref), rtol=1e-5, atol=1e-5)
    np.testing.assert_allclose(np.asarray(out32), np.asarray(out_ref), rtol=1e-5, atol=1e-5)

    # --- 2) bf16-input path (default; halves the dominant HBM read stream) ----
    params_bf16 = make_score_jk_params(w1, b1, w2, b2, L)    # compute_dtype=bf16
    a16, out16 = score_jk(src, params_bf16)
    jax.block_until_ready((a16, out16))
    # Validate against a reference fed the same bf16-rounded src / W1: this
    # isolates the intentional input rounding (per the perf review) from the
    # kernel math, which is exact (f32 accumulation everywhere).
    src_r = src.astype(jnp.bfloat16).astype(jnp.float32)
    w1_r = w1.astype(jnp.bfloat16).astype(jnp.float32)
    a_ref16, out_ref16 = reference(src_r, w1_r, b1, w2, b2)
    np.testing.assert_allclose(np.asarray(a16), np.asarray(a_ref16), rtol=1e-3, atol=1e-3)
    np.testing.assert_allclose(np.asarray(out16), np.asarray(out_ref16), rtol=1e-3, atol=1e-3)

    print("KERNEL_OK")
</pallas_src>

<mosaic_0001>
module attributes {stable_mosaic.version = 11 : i64} {
  func.func @_score_jk_kernel(%arg0: i32, %arg1: memref<64x128xf32, #tpu.memory_space<vmem>>, %arg2: memref<128x128xf32, #tpu.memory_space<vmem>>, %arg3: memref<1x128xf32, #tpu.memory_space<vmem>>, %arg4: memref<128x4xf32, #tpu.memory_space<vmem>>, %arg5: memref<1xf32, #tpu.memory_space<smem>>, %arg6: memref<4x128xf32, #tpu.memory_space<vmem>>, %arg7: memref<128x32xf32, #tpu.memory_space<vmem>>, %arg8: memref<64x4xf32, #tpu.memory_space<vmem>>, %arg9: memref<64x32xf32, #tpu.memory_space<vmem>>) attributes {dimension_semantics = [#tpu.dimension_semantics<parallel>], iteration_bounds = array<i64: 2>, scalar_prefetch = 0 : i64, scratch_operands = 0 : i64, tpu.core_type = #tpu.core_type<tc>, window_params = [{transform_indices = @transform_0, window_bounds = array<i64: 64, 128>}, {pipeline_mode = #tpu.pipeline_mode<synchronous>, transform_indices = @transform_1, window_bounds = array<i64: 128, 128>}, {pipeline_mode = #tpu.pipeline_mode<synchronous>, transform_indices = @transform_2, window_bounds = array<i64: 1, 128>}, {pipeline_mode = #tpu.pipeline_mode<synchronous>, transform_indices = @transform_3, window_bounds = array<i64: 128, 4>}, {transform_indices = @transform_4, window_bounds = array<i64: 1>}, {pipeline_mode = #tpu.pipeline_mode<synchronous>, transform_indices = @transform_5, window_bounds = array<i64: 4, 128>}, {pipeline_mode = #tpu.pipeline_mode<synchronous>, transform_indices = @transform_6, window_bounds = array<i64: 128, 32>}, {transform_indices = @transform_7, window_bounds = array<i64: 64, 4>}, {transform_indices = @transform_8, window_bounds = array<i64: 64, 32>}]} {
    %c0 = arith.constant 0 : index
    %c0_0 = arith.constant 0 : index
    %0 = vector.load %arg1[%c0, %c0_0] : memref<64x128xf32, #tpu.memory_space<vmem>>, vector<64x128xf32>
    %c0_1 = arith.constant 0 : index
    %c0_2 = arith.constant 0 : index
    %1 = vector.load %arg2[%c0_1, %c0_2] : memref<128x128xf32, #tpu.memory_space<vmem>>, vector<128x128xf32>
    %cst = arith.constant dense<0.000000e+00> : vector<64x128xf32>
    %2 = tpu.matmul %0, %1, %cst {dimension_numbers = #tpu.dot_dimension_numbers<[1], [0], [0], [1], [0, 0, 1, 1], [], []>} : vector<64x128xf32>, vector<128x128xf32>, vector<64x128xf32> -> vector<64x128xf32>
    %c0_3 = arith.constant 0 : index
    %c0_4 = arith.constant 0 : index
    %3 = vector.load %arg3[%c0_3, %c0_4] : memref<1x128xf32, #tpu.memory_space<vmem>>, vector<1x128xf32>
    %4 = vector.broadcast %3 : vector<1x128xf32> to vector<64x128xf32>
    %5 = arith.addf %2, %4 : vector<64x128xf32>
    %cst_5 = arith.constant 0.000000e+00 : f32
    %6 = vector.broadcast %cst_5 : f32 to vector<64x128xf32>
    %7 = arith.maximumf %5, %6 : vector<64x128xf32>
    %c0_6 = arith.constant 0 : index
    %c0_7 = arith.constant 0 : index
    %8 = vector.load %arg4[%c0_6, %c0_7] : memref<128x4xf32, #tpu.memory_space<vmem>>, vector<128x4xf32>
    %cst_8 = arith.constant dense<0.000000e+00> : vector<64x4xf32>
    %9 = tpu.matmul %7, %8, %cst_8 {dimension_numbers = #tpu.dot_dimension_numbers<[1], [0], [0], [1], [0, 0, 1, 1], [], []>} : vector<64x128xf32>, vector<128x4xf32>, vector<64x4xf32> -> vector<64x4xf32>
    %c0_9 = arith.constant 0 : index
    %10 = memref.load %arg5[%c0_9] : memref<1xf32, #tpu.memory_space<smem>>
    %11 = vector.broadcast %10 : f32 to vector<64x4xf32>
    %12 = arith.addf %9, %11 : vector<64x4xf32>
    %cst_10 = arith.constant dense<0xFF800000> : vector<64xf32>
    %13 = vector.multi_reduction <maximumf>, %12, %cst_10 [1] : vector<64x4xf32> to vector<64xf32>
    %14 = vector.shape_cast %13 : vector<64xf32> to vector<64x1xf32>
    %15 = vector.broadcast %14 : vector<64x1xf32> to vector<64x4xf32>
    %16 = arith.subf %12, %15 : vector<64x4xf32>
    %17 = math.exp %16 : vector<64x4xf32>
    %cst_11 = arith.constant dense<0.000000e+00> : vector<64xf32>
    %18 = vector.multi_reduction <add>, %17, %cst_11 [1] : vector<64x4xf32> to vector<64xf32>
    %19 = vector.shape_cast %18 : vector<64xf32> to vector<64x1xf32>
    %20 = tpu.reciprocal %19 : vector<64x1xf32> -> vector<64x1xf32>
    %21 = vector.broadcast %20 : vector<64x1xf32> to vector<64x4xf32>
    %22 = arith.mulf %17, %21 : vector<64x4xf32>
    %c0_12 = arith.constant 0 : index
    %c0_13 = arith.constant 0 : index
    %23 = vector.load %arg8[%c0_12, %c0_13] : memref<64x4xf32, #tpu.memory_space<vmem>>, vector<64x4xf32>
    tpu.vector_store %arg8[%c0_12, %c0_13], %22 {strides = array<i32>} : memref<64x4xf32, #tpu.memory_space<vmem>>, vector<64x4xf32>,
    %c0_14 = arith.constant 0 : index
    %c0_15 = arith.constant 0 : index
    %24 = vector.load %arg6[%c0_14, %c0_15] : memref<4x128xf32, #tpu.memory_space<vmem>>, vector<4x128xf32>
    %cst_16 = arith.constant dense<0.000000e+00> : vector<64x128xf32>
    %25 = tpu.matmul %22, %24, %cst_16 {dimension_numbers = #tpu.dot_dimension_numbers<[1], [0], [0], [1], [0, 0, 1, 1], [], []>} : vector<64x4xf32>, vector<4x128xf32>, vector<64x128xf32> -> vector<64x128xf32>
    %26 = arith.mulf %25, %0 : vector<64x128xf32>
    %c0_17 = arith.constant 0 : index
    %c0_18 = arith.constant 0 : index
    %27 = vector.load %arg7[%c0_17, %c0_18] : memref<128x32xf32, #tpu.memory_space<vmem>>, vector<128x32xf32>
    %cst_19 = arith.constant dense<0.000000e+00> : vector<64x32xf32>
    %28 = tpu.matmul %26, %27, %cst_19 {dimension_numbers = #tpu.dot_dimension_numbers<[1], [0], [0], [1], [0, 0, 1, 1], [], []>} : vector<64x128xf32>, vector<128x32xf32>, vector<64x32xf32> -> vector<64x32xf32>
    %c0_20 = arith.constant 0 : index
    %c0_21 = arith.constant 0 : index
    %29 = vector.load %arg9[%c0_20, %c0_21] : memref<64x32xf32, #tpu.memory_space<vmem>>, vector<64x32xf32>
    tpu.vector_store %arg9[%c0_20, %c0_21], %28 {strides = array<i32>} : memref<64x32xf32, #tpu.memory_space<vmem>>, vector<64x32xf32>,
    return
  }
  func.func @transform_0(%arg0: i32) -> (i32, i32) {
    %c0_i32 = arith.constant 0 : i32
    %c0_i32_0 = arith.constant 0 : i32
    return %arg0, %c0_i32 : i32, i32
  }
  func.func @transform_1(%arg0: i32) -> (i32, i32) {
    %c0_i32 = arith.constant 0 : i32
    %c0_i32_0 = arith.constant 0 : i32
    %c0_i32_1 = arith.constant 0 : i32
    return %c0_i32, %c0_i32_0 : i32, i32
  }
  func.func @transform_2(%arg0: i32) -> (i32, i32) {
    %c0_i32 = arith.constant 0 : i32
    %c0_i32_0 = arith.constant 0 : i32
    %c0_i32_1 = arith.constant 0 : i32
    return %c0_i32, %c0_i32_0 : i32, i32
  }
  func.func @transform_3(%arg0: i32) -> (i32, i32) {
    %c0_i32 = arith.constant 0 : i32
    %c0_i32_0 = arith.constant 0 : i32
    %c0_i32_1 = arith.constant 0 : i32
    return %c0_i32, %c0_i32_0 : i32, i32
  }
  func.func @transform_4(%arg0: i32) -> i32 {
    %c0_i32 = arith.constant 0 : i32
    %c0_i32_0 = arith.constant 0 : i32
    return %c0_i32 : i32
  }
  func.func @transform_5(%arg0: i32) -> (i32, i32) {
    %c0_i32 = arith.constant 0 : i32
    %c0_i32_0 = arith.constant 0 : i32
    %c0_i32_1 = arith.constant 0 : i32
    return %c0_i32, %c0_i32_0 : i32, i32
  }
  func.func @transform_6(%arg0: i32) -> (i32, i32) {
    %c0_i32 = arith.constant 0 : i32
    %c0_i32_0 = arith.constant 0 : i32
    %c0_i32_1 = arith.constant 0 : i32
    return %c0_i32, %c0_i32_0 : i32, i32
  }
  func.func @transform_7(%arg0: i32) -> (i32, i32) {
    %c0_i32 = arith.constant 0 : i32
    %c0_i32_0 = arith.constant 0 : i32
    return %arg0, %c0_i32 : i32, i32
  }
  func.func @transform_8(%arg0: i32) -> (i32, i32) {
    %c0_i32 = arith.constant 0 : i32
    %c0_i32_0 = arith.constant 0 : i32
    return %arg0, %c0_i32 : i32, i32
  }
}

</mosaic_0001>

<llo_original>
// kernel: tpu_custom_call.1
$region0: #{tpu_custom_call.1}
  #allocation0 [shape = 'u32[]', space=smem, size = 0x4, offset = 0x4, fixed_abs, tag = 'smem constant byte address 0x4 - core index']
  #allocation1 [shape = 'u32[72,128]{1,0:T(1,128)}', space=vmem, size = 0x9000, scoped, tag = 'internal scratch']
  #allocation2 [shape = 'f32[1]{0:T(128)S(6)}', space=smem, size = 0x200, scoped, tag = 'scoped memory for tpu_custom_call.1']
  %s0 = inlined_call_operand.vmem [shape: f32[128,128], index: 0, kind: input, shape index: {}]
  %s1 = inlined_call_operand.vmem [shape: f32[128,128], index: 1, kind: input, shape index: {}]
  %s2 = inlined_call_operand.hbm [shape: f32[1,128], index: 2, kind: input, shape index: {}]
  %s3 = inlined_call_operand.vmem [shape: f32[128,4], index: 3, kind: input, shape index: {}]
  %s4 = inlined_call_operand.<no memory space> [shape: f32[1], index: 4, kind: input, shape index: {}]
  %s5 = inlined_call_operand.vmem [shape: f32[4,128], index: 5, kind: input, shape index: {}]
  %s6 = inlined_call_operand.vmem [shape: f32[128,32], index: 6, kind: input, shape index: {}]
  %s7 = inlined_call_operand.vmem [shape: f32[128,4], index: 7, kind: output, shape index: {0}]
  %s8 = inlined_call_operand.vmem [shape: f32[128,32], index: 8, kind: output, shape index: {1}]
  %9 = xla_tuple %s7, %s8
  %s10 = sld [smem:[#allocation0]]
  $region73: #{tpu_custom_call.1} parent=0
    _
  %s12 = ssub.s32 1, %s10
  %s13 = scalar_select 0, %s12, %s10
  %14 = sst [smem:[#allocation2]] %s4
  $region1: #{tpu_custom_call.1} parent=0
    #allocation3 [shape = 'u8[512]{0}', space=vmem, size = 0x400, scoped, tag = 'input window, operand 2, single buffered']
    #allocation4 [shape = 's32[2]{0}', space=sflag, size = 0x8, scoped, tag = 'scoped memory for tpu_custom_call.1']
    %15 = vsyncpa [#allocation4], 0
    loop: start=0, step=1, limit=4
    $region2: #{tpu_custom_call.1} parent=1 // loop_pre_header
      _
    $region3: #{tpu_custom_call.1} parent=1 // loop_header
      %s17 = sphi 0, %s21
      %p18 = scmp.ge.s32.totalorder %s17, 4
      %s27 = sphi 0, %s29
      %s30 = sphi 0, %s27
      %s31 = sphi 0, %s30
      %s47 = sphi 0, %s31
      %s51 = sphi 0, %s51
      %s53 = sphi 0, %s51
      %s54 = sphi 0, %s53
      %s68 = sphi 0, %s54
      %s72 = sphi 0, %s72
      %s74 = sphi 0, %s72
      %s75 = sphi 0, %s74
      %s89 = sphi 0, %s75
      %s93 = sphi 0, %s93
      %s95 = sphi 0, %s93
      %s96 = sphi 0, %s95
      %s110 = sphi 0, %s96
      %s114 = sphi 0, %s114
      %s116 = sphi 0, %s114
      %s117 = sphi 0, %s116
      %s131 = sphi 0, %s117
      %s135 = sphi 0, %s135
      %s137 = sphi 0, %s135
      %s138 = sphi 0, %s137
      %s152 = sphi 0, %s138
      %s156 = sphi 0, %s156
      %s158 = sphi 0, %s156
      %s159 = sphi 0, %s158
      %s173 = sphi 0, %s159
      %s179 = sphi 0, %s181
      %s182 = sphi 0, %s179
      %s183 = sphi 0, %s182
      %s199 = sphi 0, %s183
      %s205 = sphi 0, %s207
      %s208 = sphi 0, %s205
      %s209 = sphi 0, %s208
      %s225 = sphi 0, %s209
    $region4: #{tpu_custom_call.1} parent=1 // loop_header_branch
      %20 = sbr.rel (%p18) target = $region8
    $region5: #{tpu_custom_call.1} parent=1 // loop_body
      %s22 = ssub.s32 %s17, 1
      %s23 = ssub.s32 %s17, 2
      %s24 = sadd.s32 %s17, 1
      %s25 = ssub.s32 %s17, %s24
      %p26 = scmp.eq.s32.totalorder %s25, 0
      %s28 = sadd.s32 %s27, 1
      %s29 = scalar_select %p26, %s27, %s28
      %p32 = pneg %p26
      %p33 = scmp.eq.s32.totalorder %s17, 1
      %p34 = por %p32, %p33
      %p35 = scmp.ne.s32.totalorder %s27, %s30
      %p36 = scmp.eq.s32.totalorder %s17, 0
      %p37 = por %p35, %p36
      %p38 = scmp.ne.s32.totalorder %s27, %s30
      %p39 = scmp.eq.s32.totalorder %s22, 1
      %p40 = por %p38, %p39
      %p41 = scmp.ne.s32.totalorder %s30, %s31
      %p42 = scmp.eq.s32.totalorder %s22, 0
      %p43 = por %p41, %p42
      %p44 = scmp.ne.s32.totalorder %s30, %s31
      %p45 = scmp.eq.s32.totalorder %s23, 1
      %p46 = por %p44, %p45
      %p48 = scmp.ne.s32.totalorder %s31, %s47
      %p49 = scmp.eq.s32.totalorder %s23, 0
      %p50 = por %p48, %p49
      %s52 = sadd.s32 %s51, 1
      %p55 = scmp.eq.s32.totalorder %s17, 1
      %p56 = scmp.ne.s32.totalorder %s51, %s53
      %p57 = scmp.eq.s32.totalorder %s17, 0
      %p58 = por %p56, %p57
      %p59 = scmp.ne.s32.totalorder %s51, %s53
      %p60 = scmp.eq.s32.totalorder %s22, 1
      %p61 = por %p59, %p60
      %p62 = scmp.ne.s32.totalorder %s53, %s54
      %p63 = scmp.eq.s32.totalorder %s22, 0
      %p64 = por %p62, %p63
      %p65 = scmp.ne.s32.totalorder %s53, %s54
      %p66 = scmp.eq.s32.totalorder %s23, 1
      %p67 = por %p65, %p66
      %p69 = scmp.ne.s32.totalorder %s54, %s68
      %p70 = scmp.eq.s32.totalorder %s23, 0
      %p71 = por %p69, %p70
      %s73 = sadd.s32 %s72, 1
      %p76 = scmp.eq.s32.totalorder %s17, 1
      %p77 = scmp.ne.s32.totalorder %s72, %s74
      %p78 = scmp.eq.s32.totalorder %s17, 0
      %p79 = por %p77, %p78
      %p80 = scmp.ne.s32.totalorder %s72, %s74
      %p81 = scmp.eq.s32.totalorder %s22, 1
      %p82 = por %p80, %p81
      %p83 = scmp.ne.s32.totalorder %s74, %s75
      %p84 = scmp.eq.s32.totalorder %s22, 0
      %p85 = por %p83, %p84
      %p86 = scmp.ne.s32.totalorder %s74, %s75
      %p87 = scmp.eq.s32.totalorder %s23, 1
      %p88 = por %p86, %p87
      %p90 = scmp.ne.s32.totalorder %s75, %s89
      %p91 = scmp.eq.s32.totalorder %s23, 0
      %p92 = por %p90, %p91
      %s94 = sadd.s32 %s93, 1
      %p97 = scmp.eq.s32.totalorder %s17, 1
      %p98 = scmp.ne.s32.totalorder %s93, %s95
      %p99 = scmp.eq.s32.totalorder %s17, 0
      %p100 = por %p98, %p99
      %p101 = scmp.ne.s32.totalorder %s93, %s95
      %p102 = scmp.eq.s32.totalorder %s22, 1
      %p103 = por %p101, %p102
      %p104 = scmp.ne.s32.totalorder %s95, %s96
      %p105 = scmp.eq.s32.totalorder %s22, 0
      %p106 = por %p104, %p105
      %p107 = scmp.ne.s32.totalorder %s95, %s96
      %p108 = scmp.eq.s32.totalorder %s23, 1
      %p109 = por %p107, %p108
      %p111 = scmp.ne.s32.totalorder %s96, %s110
      %p112 = scmp.eq.s32.totalorder %s23, 0
      %p113 = por %p111, %p112
      %s115 = sadd.s32 %s114, 1
      %p118 = scmp.eq.s32.totalorder %s17, 1
      %p119 = scmp.ne.s32.totalorder %s114, %s116
      %p120 = scmp.eq.s32.totalorder %s17, 0
      %p121 = por %p119, %p120
      %p122 = scmp.ne.s32.totalorder %s114, %s116
      %p123 = scmp.eq.s32.totalorder %s22, 1
      %p124 = por %p122, %p123
      %p125 = scmp.ne.s32.totalorder %s116, %s117
      %p126 = scmp.eq.s32.totalorder %s22, 0
      %p127 = por %p125, %p126
      %p128 = scmp.ne.s32.totalorder %s116, %s117
      %p129 = scmp.eq.s32.totalorder %s23, 1
      %p130 = por %p128, %p129
      %p132 = scmp.ne.s32.totalorder %s117, %s131
      %p133 = scmp.eq.s32.totalorder %s23, 0
      %p134 = por %p132, %p133
      %s136 = sadd.s32 %s135, 1
      %p139 = scmp.eq.s32.totalorder %s17, 1
      %p140 = scmp.ne.s32.totalorder %s135, %s137
      %p141 = scmp.eq.s32.totalorder %s17, 0
      %p142 = por %p140, %p141
      %p143 = scmp.ne.s32.totalorder %s135, %s137
      %p144 = scmp.eq.s32.totalorder %s22, 1
      %p145 = por %p143, %p144
      %p146 = scmp.ne.s32.totalorder %s137, %s138
      %p147 = scmp.eq.s32.totalorder %s22, 0
      %p148 = por %p146, %p147
      %p149 = scmp.ne.s32.totalorder %s137, %s138
      %p150 = scmp.eq.s32.totalorder %s23, 1
      %p151 = por %p149, %p150
      %p153 = scmp.ne.s32.totalorder %s138, %s152
      %p154 = scmp.eq.s32.totalorder %s23, 0
      %p155 = por %p153, %p154
      %s157 = sadd.s32 %s156, 1
      %p160 = scmp.eq.s32.totalorder %s17, 1
      %p161 = scmp.ne.s32.totalorder %s156, %s158
      %p162 = scmp.eq.s32.totalorder %s17, 0
      %p163 = por %p161, %p162
      %p164 = scmp.ne.s32.totalorder %s156, %s158
      %p165 = scmp.eq.s32.totalorder %s22, 1
      %p166 = por %p164, %p165
      %p167 = scmp.ne.s32.totalorder %s158, %s159
      %p168 = scmp.eq.s32.totalorder %s22, 0
      %p169 = por %p167, %p168
      %p170 = scmp.ne.s32.totalorder %s158, %s159
      %p171 = scmp.eq.s32.totalorder %s23, 1
      %p172 = por %p170, %p171
      %p174 = scmp.ne.s32.totalorder %s159, %s173
      %p175 = scmp.eq.s32.totalorder %s23, 0
      %p176 = por %p174, %p175
      %s177 = ssub.s32 %s17, %s24
      %p178 = scmp.eq.s32.totalorder %s177, 0
      %s180 = sadd.s32 %s179, 1
      %s181 = scalar_select %p178, %s179, %s180
      %p184 = pneg %p178
      %p185 = scmp.eq.s32.totalorder %s17, 1
      %p186 = por %p184, %p185
      %p187 = scmp.ne.s32.totalorder %s179, %s182
      %p188 = scmp.eq.s32.totalorder %s17, 0
      %p189 = por %p187, %p188
      %p190 = scmp.ne.s32.totalorder %s179, %s182
      %p191 = scmp.eq.s32.totalorder %s22, 1
      %p192 = por %p190, %p191
      %p193 = scmp.ne.s32.totalorder %s182, %s183
      %p194 = scmp.eq.s32.totalorder %s22, 0
      %p195 = por %p193, %p194
      %p196 = scmp.ne.s32.totalorder %s182, %s183
      %p197 = scmp.eq.s32.totalorder %s23, 1
      %p198 = por %p196, %p197
      %p200 = scmp.ne.s32.totalorder %s183, %s199
      %p201 = scmp.eq.s32.totalorder %s23, 0
      %p202 = por %p200, %p201
      %s203 = ssub.s32 %s17, %s24
      %p204 = scmp.eq.s32.totalorder %s203, 0
      %s206 = sadd.s32 %s205, 1
      %s207 = scalar_select %p204, %s205, %s206
      %p210 = pneg %p204
      %p211 = scmp.eq.s32.totalorder %s17, 1
      %p212 = por %p210, %p211
      %p213 = scmp.ne.s32.totalorder %s205, %s208
      %p214 = scmp.eq.s32.totalorder %s17, 0
      %p215 = por %p213, %p214
      %p216 = scmp.ne.s32.totalorder %s205, %s208
      %p217 = scmp.eq.s32.totalorder %s22, 1
      %p218 = por %p216, %p217
      %p219 = scmp.ne.s32.totalorder %s208, %s209
      %p220 = scmp.eq.s32.totalorder %s22, 0
      %p221 = por %p219, %p220
      %p222 = scmp.ne.s32.totalorder %s208, %s209
      %p223 = scmp.eq.s32.totalorder %s23, 1
      %p224 = por %p222, %p223
      %p226 = scmp.ne.s32.totalorder %s209, %s225
      %p227 = scmp.eq.s32.totalorder %s23, 0
      %p228 = por %p226, %p227
      %p229 = scmp.le.s32.totalorder 1, %s17
      %p230 = scmp.lt.s32.totalorder %s17, 3
      %p231 = pnand %p229, %p230
      %p232 = pneg %p231
      // Predicated region
      $region9: #{tpu_custom_call.1} parent=5 // pred_check
        _
      $region10: #{tpu_custom_call.1} parent=5 // pred_check_branch
        %234 = sbr.rel (%p231) target = $region12
      $region11: #{tpu_custom_call.1} parent=5 // pred_region
        %s235 = ssub.s32 %s17, 1
        // Predicated region
        $region13: #{tpu_custom_call.1} parent=11 // pred_check
          %p236 = pneg %p64
        $region14: #{tpu_custom_call.1} parent=11 // pred_check_branch
          %238 = sbr.rel (%p236) target = $region16
        $region15: #{tpu_custom_call.1} parent=11 // pred_region
          _
        $region16: #{tpu_custom_call.1} parent=11 // pred_fallthru
          _
        // Predicated region
        $region17: #{tpu_custom_call.1} parent=11 // pred_check
          %p239 = pneg %p85
        $region18: #{tpu_custom_call.1} parent=11 // pred_check_branch
          %241 = sbr.rel (%p239) target = $region20
        $region19: #{tpu_custom_call.1} parent=11 // pred_region
          %243 = vsyncadd [#allocation4], 0
          %s245 = sshll.u32 %s2, 4
          %s246 = int_to_ptr.hbm [resolvable:$true] %s245
          %s247 = sshll.u32 [#allocation3], 4
          %s248 = int_to_ptr.vmem [resolvable:$true] %s247
          %250 = dma.hbm_to_vmem [thread:$0]  %s246, 16, %s248, [#allocation4]
        $region20: #{tpu_custom_call.1} parent=11 // pred_fallthru
          _
        // Predicated region
        $region21: #{tpu_custom_call.1} parent=11 // pred_check
          %p251 = pneg %p106
        $region22: #{tpu_custom_call.1} parent=11 // pred_check_branch
          %253 = sbr.rel (%p251) target = $region24
        $region23: #{tpu_custom_call.1} parent=11 // pred_region
          _
        $region24: #{tpu_custom_call.1} parent=11 // pred_fallthru
          _
        // Predicated region
        $region25: #{tpu_custom_call.1} parent=11 // pred_check
          %p254 = pneg %p127
        $region26: #{tpu_custom_call.1} parent=11 // pred_check_branch
          %256 = sbr.rel (%p254) target = $region28
        $region27: #{tpu_custom_call.1} parent=11 // pred_region
          _
        $region28: #{tpu_custom_call.1} parent=11 // pred_fallthru
          _
        // Predicated region
        $region29: #{tpu_custom_call.1} parent=11 // pred_check
          %p257 = pneg %p148
        $region30: #{tpu_custom_call.1} parent=11 // pred_check_branch
          %259 = sbr.rel (%p257) target = $region32
        $region31: #{tpu_custom_call.1} parent=11 // pred_region
          _
        $region32: #{tpu_custom_call.1} parent=11 // pred_fallthru
          _
        // Predicated region
        $region33: #{tpu_custom_call.1} parent=11 // pred_check
          %p260 = pneg %p169
        $region34: #{tpu_custom_call.1} parent=11 // pred_check_branch
          %262 = sbr.rel (%p260) target = $region36
        $region35: #{tpu_custom_call.1} parent=11 // pred_region
          _
        $region36: #{tpu_custom_call.1} parent=11 // pred_fallthru
          _
      $region12: #{tpu_custom_call.1} parent=5 // pred_fallthru
        _
      %p263 = scmp.lt.s32.totalorder %s17, 2
      // Predicated region
      $region37: #{tpu_custom_call.1} parent=5 // pred_check
        %p264 = pneg %p263
      $region38: #{tpu_custom_call.1} parent=5 // pred_check_branch
        %266 = sbr.rel (%p264) target = $region40
      $region39: #{tpu_custom_call.1} parent=5 // pred_region
        // Predicated region
        $region41: #{tpu_custom_call.1} parent=39 // pred_check
          %p267 = pneg %p37
        $region42: #{tpu_custom_call.1} parent=39 // pred_check_branch
          %269 = sbr.rel (%p267) target = $region44
        $region43: #{tpu_custom_call.1} parent=39 // pred_region
          %s270 = smul.u32 8, %s17
          %p271 = scmp.lt.s32.totalorder %s270, 15
          %s272 = scalar_select %p271, %s270, 15
          %s273 = smul.addr %s272, 8
          %s274 = scalar_lea.vmem %s0, %s273
          %s275 = smul.u32 8, %s17
        $region44: #{tpu_custom_call.1} parent=39 // pred_fallthru
          _
      $region40: #{tpu_custom_call.1} parent=5 // pred_fallthru
        _
      %p276 = scmp.le.s32.totalorder 1, %s17
      %p277 = scmp.lt.s32.totalorder %s17, 3
      %p278 = pnand %p276, %p277
      %p279 = pneg %p278
      // Predicated region
      $region45: #{tpu_custom_call.1} parent=5 // pred_check
        _
      $region46: #{tpu_custom_call.1} parent=5 // pred_check_branch
        %281 = sbr.rel (%p278) target = $region48
      $region47: #{tpu_custom_call.1} parent=5 // pred_region
        %s282 = ssub.s32 %s17, 1
        // Predicated region
        $region49: #{tpu_custom_call.1} parent=47 // pred_check
          %p283 = pneg %p85
        $region50: #{tpu_custom_call.1} parent=47 // pred_check_branch
          %285 = sbr.rel (%p283) target = $region52
        $region51: #{tpu_custom_call.1} parent=47 // pred_region
          %287 = dma.done [#allocation4], 16
        $region52: #{tpu_custom_call.1} parent=47 // pred_fallthru
          _
        %s288 = smul.u32 8, %s22
        %p289 = scmp.lt.s32.totalorder %s288, 15
        %s290 = scalar_select %p289, %s288, 15
        %s291 = smul.addr %s290, 8
        %s292 = scalar_lea.vmem %s0, %s291
        %p293 = pneg %p43
        %p294 = pneg %p40
        %p295 = pneg %p64
        %p296 = pneg %p61
        %p297 = pneg %p85
        %p298 = pneg %p82
        %p299 = pneg %p106
        %p300 = pneg %p103
        %p301 = pneg %p127
        %p302 = pneg %p124
        %p303 = pneg %p148
        %p304 = pneg %p145
        %p305 = pneg %p169
        %p306 = pneg %p166
        %p307 = pneg %p195
        %p308 = pneg %p192
        %s309 = smul.u32 8, %s22
        %p310 = scmp.lt.s32.totalorder %s309, 15
        %s311 = scalar_select %p310, %s309, 15
        %s312 = smul.addr %s311, 8
        %s313 = scalar_lea.vmem %s7, %s312
        %p314 = pneg %p221
        %p315 = pneg %p218
        %s316 = smul.u32 8, %s22
        %p317 = scmp.lt.s32.totalorder %s316, 15
        %s318 = scalar_select %p317, %s316, 15
        %s319 = smul.addr %s318, 8
        %s320 = scalar_lea.vmem %s8, %s319
        %s321 = smul.u32 8, %s22
        %p322 = scmp.lt.s32.totalorder %s321, 15
        %s323 = scalar_select %p322, %s321, 15
        %s324 = smul.addr %s323, 8
        %s325 = scalar_lea.vmem %s0, %s324
        %s326 = smul.u32 8, %s22
        %s327 = smul.u32 8, %s22
        %p328 = scmp.lt.s32.totalorder %s327, 15
        %s329 = scalar_select %p328, %s327, 15
        %s330 = smul.addr %s329, 8
        %s331 = scalar_lea.vmem %s7, %s330
        %s332 = smul.u32 8, %s22
        %s333 = smul.u32 8, %s22
        %p334 = scmp.lt.s32.totalorder %s333, 15
        %s335 = scalar_select %p334, %s333, 15
        %s336 = smul.addr %s335, 8
        %s337 = scalar_lea.vmem %s8, %s336
        %s338 = smul.u32 8, %s22
        %v339 = vld [vmem:[%s325] sm:$0xff]
        %v340 = vld [vmem:[%s325 + $0x8] sm:$0xff]
        %v341 = vld [vmem:[%s325 + $0x10] sm:$0xff]
        %v342 = vld [vmem:[%s325 + $0x18] sm:$0xff]
        %v343 = vld [vmem:[%s325 + $0x20] sm:$0xff]
        %v344 = vld [vmem:[%s325 + $0x28] sm:$0xff]
        %v345 = vld [vmem:[%s325 + $0x30] sm:$0xff]
        %v346 = vld [vmem:[%s325 + $0x38] sm:$0xff]
        %v347 = vld [vmem:[%s1] sm:$0xff]
        %v348 = vld [vmem:[%s1 + $0x8] sm:$0xff]
        %v349 = vld [vmem:[%s1 + $0x10] sm:$0xff]
        %v350 = vld [vmem:[%s1 + $0x18] sm:$0xff]
        %v351 = vld [vmem:[%s1 + $0x20] sm:$0xff]
        %v352 = vld [vmem:[%s1 + $0x28] sm:$0xff]
        %v353 = vld [vmem:[%s1 + $0x30] sm:$0xff]
        %v354 = vld [vmem:[%s1 + $0x38] sm:$0xff]
        %v355 = vld [vmem:[%s1 + $0x40] sm:$0xff]
        %v356 = vld [vmem:[%s1 + $0x48] sm:$0xff]
        %v357 = vld [vmem:[%s1 + $0x50] sm:$0xff]
        %v358 = vld [vmem:[%s1 + $0x58] sm:$0xff]
        %v359 = vld [vmem:[%s1 + $0x60] sm:$0xff]
        %v360 = vld [vmem:[%s1 + $0x68] sm:$0xff]
        %v361 = vld [vmem:[%s1 + $0x70] sm:$0xff]
        %v362 = vld [vmem:[%s1 + $0x78] sm:$0xff]
        %v363 = vld [vmem:[#allocation3] sm:$0x1]
        %v365 = vperm.slane %v363, 0
        %367 = vmatpush.msra.mxu0 %v362
        %368 = vmatpush.msra.mxu0 %v361
        %369 = vmatpush.msra.mxu0 %v360
        %370 = vmatpush.msra.mxu0 %v359
        %371 = vmatpush.msra.mxu0 %v358
        %372 = vmatpush.msra.mxu0 %v357
        %373 = vmatpush.msra.mxu0 %v356
        %374 = vmatpush.msra.mxu0 %v355
        %375 = vmatpush.msra.mxu0 %v354
        %376 = vmatpush.msra.mxu0 %v353
        %377 = vmatpush.msra.mxu0 %v352
        %378 = vmatpush.msra.mxu0 %v351
        %379 = vmatpush.msra.mxu0 %v350
        %380 = vmatpush.msra.mxu0 %v349
        %381 = vmatpush.msra.mxu0 %v348
        %382 = vmatpush.msra.mxu0 %v347
        %383 = vmatmul.f32.gmra.mxu0 %v339
        %v384 = vpop.f32.mrf.mxu0
        %v385 = vadd.f32 %v365, %v384
        %386 = vmatmul.f32.gmra.mxu0 %v340
        %v387 = vpop.f32.mrf.mxu0
        %v388 = vadd.f32 %v365, %v387
        %389 = vmatmul.f32.gmra.mxu0 %v341
        %v390 = vpop.f32.mrf.mxu0
        %v391 = vadd.f32 %v365, %v390
        %392 = vmatmul.f32.gmra.mxu0 %v342
        %v393 = vpop.f32.mrf.mxu0
        %v394 = vadd.f32 %v365, %v393
        %395 = vmatmul.f32.gmra.mxu0 %v343
        %v396 = vpop.f32.mrf.mxu0
        %v397 = vadd.f32 %v365, %v396
        %398 = vmatmul.f32.gmra.mxu0 %v344
        %v399 = vpop.f32.mrf.mxu0
        %v400 = vadd.f32 %v365, %v399
        %401 = vmatmul.f32.gmra.mxu0 %v345
        %v402 = vpop.f32.mrf.mxu0
        %v403 = vadd.f32 %v365, %v402
        %404 = vmatmul.f32.gmra.mxu0 %v346
        %v405 = vpop.f32.mrf.mxu0
        %v406 = vadd.f32 %v365, %v405
        %407 = vdwg.mxu0
        %v408 = vmax.f32 %v385, 0.0
        %v409 = vmax.f32 %v388, 0.0
        %v410 = vmax.f32 %v391, 0.0
        %v411 = vmax.f32 %v394, 0.0
        %v412 = vmax.f32 %v397, 0.0
        %v413 = vmax.f32 %v400, 0.0
        %v414 = vmax.f32 %v403, 0.0
        %v415 = vmax.f32 %v406, 0.0
        %v416 = vld [vmem:[%s3] sm:$0xff]
        %v417 = vld [vmem:[%s3 + $0x8] sm:$0xff]
        %v418 = vld [vmem:[%s3 + $0x10] sm:$0xff]
        %v419 = vld [vmem:[%s3 + $0x18] sm:$0xff]
        %v420 = vld [vmem:[%s3 + $0x20] sm:$0xff]
        %v421 = vld [vmem:[%s3 + $0x28] sm:$0xff]
        %v422 = vld [vmem:[%s3 + $0x30] sm:$0xff]
        %v423 = vld [vmem:[%s3 + $0x38] sm:$0xff]
        %v424 = vld [vmem:[%s3 + $0x40] sm:$0xff]
        %v425 = vld [vmem:[%s3 + $0x48] sm:$0xff]
        %v426 = vld [vmem:[%s3 + $0x50] sm:$0xff]
        %v427 = vld [vmem:[%s3 + $0x58] sm:$0xff]
        %v428 = vld [vmem:[%s3 + $0x60] sm:$0xff]
        %v429 = vld [vmem:[%s3 + $0x68] sm:$0xff]
        %v430 = vld [vmem:[%s3 + $0x70] sm:$0xff]
        %v431 = vld [vmem:[%s3 + $0x78] sm:$0xff]
        %s432 = sld [smem:[#allocation2]]
        %v433 = vstv %s432
        %434 = vmatpush.msra.mxu0 %v431
        %435 = vmatpush.msra.mxu0 %v430
        %436 = vmatpush.msra.mxu0 %v429
        %437 = vmatpush.msra.mxu0 %v428
        %438 = vmatpush.msra.mxu0 %v427
        %439 = vmatpush.msra.mxu0 %v426
        %440 = vmatpush.msra.mxu0 %v425
        %441 = vmatpush.msra.mxu0 %v424
        %442 = vmatpush.msra.mxu0 %v423
        %443 = vmatpush.msra.mxu0 %v422
        %444 = vmatpush.msra.mxu0 %v421
        %445 = vmatpush.msra.mxu0 %v420
        %446 = vmatpush.msra.mxu0 %v419
        %447 = vmatpush.msra.mxu0 %v418
        %448 = vmatpush.msra.mxu0 %v417
        %449 = vmatpush.msra.mxu0 %v416
        %450 = vmatmul.f32.gmra.mxu0 %v408
        %v451 = vpop.f32.mrf.mxu0
        %v452 = vadd.f32 %v433, %v451
        %453 = vmatmul.f32.gmra.mxu0 %v409
        %v454 = vpop.f32.mrf.mxu0
        %v455 = vadd.f32 %v433, %v454
        %456 = vmatmul.f32.gmra.mxu0 %v410
        %v457 = vpop.f32.mrf.mxu0
        %v458 = vadd.f32 %v433, %v457
        %459 = vmatmul.f32.gmra.mxu0 %v411
        %v460 = vpop.f32.mrf.mxu0
        %v461 = vadd.f32 %v433, %v460
        %462 = vmatmul.f32.gmra.mxu0 %v412
        %v463 = vpop.f32.mrf.mxu0
        %v464 = vadd.f32 %v433, %v463
        %465 = vmatmul.f32.gmra.mxu0 %v413
        %v466 = vpop.f32.mrf.mxu0
        %v467 = vadd.f32 %v433, %v466
        %468 = vmatmul.f32.gmra.mxu0 %v414
        %v469 = vpop.f32.mrf.mxu0
        %v470 = vadd.f32 %v433, %v469
        %471 = vmatmul.f32.gmra.mxu0 %v415
        %v472 = vpop.f32.mrf.mxu0
        %v473 = vadd.f32 %v433, %v472
        %474 = vdwg.mxu0
        %vm475 = vcmask 31744
        %v476 = vsel %vm475, %v452, -inf
        %477 = vmax.xlane.f32.xlu0 %v476
        %v478 = vpop.xlane.xlu0 %477
        %v479 = vsel %vm475, %v455, -inf
        %480 = vmax.xlane.f32.xlu0 %v479
        %v481 = vpop.xlane.xlu0 %480
        %v482 = vsel %vm475, %v458, -inf
        %483 = vmax.xlane.f32.xlu0 %v482
        %v484 = vpop.xlane.xlu0 %483
        %v485 = vsel %vm475, %v461, -inf
        %486 = vmax.xlane.f32.xlu0 %v485
        %v487 = vpop.xlane.xlu0 %486
        %v488 = vsel %vm475, %v464, -inf
        %489 = vmax.xlane.f32.xlu0 %v488
        %v490 = vpop.xlane.xlu0 %489
        %v491 = vsel %vm475, %v467, -inf
        %492 = vmax.xlane.f32.xlu0 %v491
        %v493 = vpop.xlane.xlu0 %492
        %v494 = vsel %vm475, %v470, -inf
        %495 = vmax.xlane.f32.xlu0 %v494
        %v496 = vpop.xlane.xlu0 %495
        %v497 = vsel %vm475, %v473, -inf
        %498 = vmax.xlane.f32.xlu0 %v497
        %v499 = vpop.xlane.xlu0 %498
        %v500 = vsub.f32 %v452, %v478
        %v501 = vsub.f32 %v455, %v481
        %v502 = vsub.f32 %v458, %v484
        %v503 = vsub.f32 %v461, %v487
        %v504 = vsub.f32 %v464, %v490
        %v505 = vsub.f32 %v467, %v493
        %v506 = vsub.f32 %v470, %v496
        %v507 = vsub.f32 %v473, %v499
        %v508 = vmul.f32 %v500, 1.442695
        %v509 = vpow.pop %v508
        %v510 = vmul.f32 %v501, 1.442695
        %v511 = vpow.pop %v510
        %v512 = vmul.f32 %v502, 1.442695
        %v513 = vpow.pop %v512
        %v514 = vmul.f32 %v503, 1.442695
        %v515 = vpow.pop %v514
        %v516 = vmul.f32 %v504, 1.442695
        %v517 = vpow.pop %v516
        %v518 = vmul.f32 %v505, 1.442695
        %v519 = vpow.pop %v518
        %v520 = vmul.f32 %v506, 1.442695
        %v521 = vpow.pop %v520
        %v522 = vmul.f32 %v507, 1.442695
        %v523 = vpow.pop %v522
        %v524 = vsel %vm475, %v509, 0.0
        %525 = vadd.xlane.f32.xlu0 %v524
        %v526 = vpop.xlane.xlu0 %525
        %v527 = vsel %vm475, %v511, 0.0
        %528 = vadd.xlane.f32.xlu0 %v527
        %v529 = vpop.xlane.xlu0 %528
        %v530 = vsel %vm475, %v513, 0.0
        %531 = vadd.xlane.f32.xlu0 %v530
        %v532 = vpop.xlane.xlu0 %531
        %v533 = vsel %vm475, %v515, 0.0
        %534 = vadd.xlane.f32.xlu0 %v533
        %v535 = vpop.xlane.xlu0 %534
        %v536 = vsel %vm475, %v517, 0.0
        %537 = vadd.xlane.f32.xlu0 %v536
        %v538 = vpop.xlane.xlu0 %537
        %v539 = vsel %vm475, %v519, 0.0
        %540 = vadd.xlane.f32.xlu0 %v539
        %v541 = vpop.xlane.xlu0 %540
        %v542 = vsel %vm475, %v521, 0.0
        %543 = vadd.xlane.f32.xlu0 %v542
        %v544 = vpop.xlane.xlu0 %543
        %v545 = vsel %vm475, %v523, 0.0
        %546 = vadd.xlane.f32.xlu0 %v545
        %v547 = vpop.xlane.xlu0 %546
        %v548 = vrcp.pop %v526
        %v549 = vmul.f32 %v526, %v548
        %v550 = vsub.f32 1.0, %v549
        %v551 = vmul.f32 %v548, %v550
        %v552 = vadd.f32 %v548, %v551
        %vm553 = vweird.f32 %v526
        %vm554 = vweird.f32 %v548
        %vm555 = vmor %vm553, %vm554
        %v556 = vsel %vm555, %v548, %v552
        %v557 = vand.u32 2147483647, %v526
        %vm558 = vcmp.eq.f32.partialorder %v557, 8.507059e+37
        %v559 = vand.u32 %v526, 2147483648
        %v560 = vor.u32 1.1754944e-38, %v559
        %v561 = vsel %vm558, %v560, %v556
        %v562 = vrcp.pop %v529
        %v563 = vmul.f32 %v529, %v562
        %v564 = vsub.f32 1.0, %v563
        %v565 = vmul.f32 %v562, %v564
        %v566 = vadd.f32 %v562, %v565
        %vm567 = vweird.f32 %v529
        %vm568 = vweird.f32 %v562
        %vm569 = vmor %vm567, %vm568
        %v570 = vsel %vm569, %v562, %v566
        %v571 = vand.u32 2147483647, %v529
        %vm572 = vcmp.eq.f32.partialorder %v571, 8.507059e+37
        %v573 = vand.u32 %v529, 2147483648
        %v574 = vor.u32 1.1754944e-38, %v573
        %v575 = vsel %vm572, %v574, %v570
        %v576 = vrcp.pop %v532
        %v577 = vmul.f32 %v532, %v576
        %v578 = vsub.f32 1.0, %v577
        %v579 = vmul.f32 %v576, %v578
        %v580 = vadd.f32 %v576, %v579
        %vm581 = vweird.f32 %v532
        %vm582 = vweird.f32 %v576
        %vm583 = vmor %vm581, %vm582
        %v584 = vsel %vm583, %v576, %v580
        %v585 = vand.u32 2147483647, %v532
        %vm586 = vcmp.eq.f32.partialorder %v585, 8.507059e+37
        %v587 = vand.u32 %v532, 2147483648
        %v588 = vor.u32 1.1754944e-38, %v587
        %v589 = vsel %vm586, %v588, %v584
        %v590 = vrcp.pop %v535
        %v591 = vmul.f32 %v535, %v590
        %v592 = vsub.f32 1.0, %v591
        %v593 = vmul.f32 %v590, %v592
        %v594 = vadd.f32 %v590, %v593
        %vm595 = vweird.f32 %v535
        %vm596 = vweird.f32 %v590
        %vm597 = vmor %vm595, %vm596
        %v598 = vsel %vm597, %v590, %v594
        %v599 = vand.u32 2147483647, %v535
        %vm600 = vcmp.eq.f32.partialorder %v599, 8.507059e+37
        %v601 = vand.u32 %v535, 2147483648
        %v602 = vor.u32 1.1754944e-38, %v601
        %v603 = vsel %vm600, %v602, %v598
        %v604 = vrcp.pop %v538
        %v605 = vmul.f32 %v538, %v604
        %v606 = vsub.f32 1.0, %v605
        %v607 = vmul.f32 %v604, %v606
        %v608 = vadd.f32 %v604, %v607
        %vm609 = vweird.f32 %v538
        %vm610 = vweird.f32 %v604
        %vm611 = vmor %vm609, %vm610
        %v612 = vsel %vm611, %v604, %v608
        %v613 = vand.u32 2147483647, %v538
        %vm614 = vcmp.eq.f32.partialorder %v613, 8.507059e+37
        %v615 = vand.u32 %v538, 2147483648
        %v616 = vor.u32 1.1754944e-38, %v615
        %v617 = vsel %vm614, %v616, %v612
        %v618 = vrcp.pop %v541
        %v619 = vmul.f32 %v541, %v618
        %v620 = vsub.f32 1.0, %v619
        %v621 = vmul.f32 %v618, %v620
        %v622 = vadd.f32 %v618, %v621
        %vm623 = vweird.f32 %v541
        %vm624 = vweird.f32 %v618
        %vm625 = vmor %vm623, %vm624
        %v626 = vsel %vm625, %v618, %v622
        %v627 = vand.u32 2147483647, %v541
        %vm628 = vcmp.eq.f32.partialorder %v627, 8.507059e+37
        %v629 = vand.u32 %v541, 2147483648
        %v630 = vor.u32 1.1754944e-38, %v629
        %v631 = vsel %vm628, %v630, %v626
        %v632 = vrcp.pop %v544
        %v633 = vmul.f32 %v544, %v632
        %v634 = vsub.f32 1.0, %v633
        %v635 = vmul.f32 %v632, %v634
        %v636 = vadd.f32 %v632, %v635
        %vm637 = vweird.f32 %v544
        %vm638 = vweird.f32 %v632
        %vm639 = vmor %vm637, %vm638
        %v640 = vsel %vm639, %v632, %v636
        %v641 = vand.u32 2147483647, %v544
        %vm642 = vcmp.eq.f32.partialorder %v641, 8.507059e+37
        %v643 = vand.u32 %v544, 2147483648
        %v644 = vor.u32 1.1754944e-38, %v643
        %v645 = vsel %vm642, %v644, %v640
        %v646 = vrcp.pop %v547
        %v647 = vmul.f32 %v547, %v646
        %v648 = vsub.f32 1.0, %v647
        %v649 = vmul.f32 %v646, %v648
        %v650 = vadd.f32 %v646, %v649
        %vm651 = vweird.f32 %v547
        %vm652 = vweird.f32 %v646
        %vm653 = vmor %vm651, %vm652
        %v654 = vsel %vm653, %v646, %v650
        %v655 = vand.u32 2147483647, %v547
        %vm656 = vcmp.eq.f32.partialorder %v655, 8.507059e+37
        %v657 = vand.u32 %v547, 2147483648
        %v658 = vor.u32 1.1754944e-38, %v657
        %v659 = vsel %vm656, %v658, %v654
        %v660 = vmul.f32 %v509, %v561
        %v661 = vmul.f32 %v511, %v575
        %v662 = vmul.f32 %v513, %v589
        %v663 = vmul.f32 %v515, %v603
        %v664 = vmul.f32 %v517, %v617
        %v665 = vmul.f32 %v519, %v631
        %v666 = vmul.f32 %v521, %v645
        %v667 = vmul.f32 %v523, %v659
        %668 = vst.msk [vmem:[%s331] sm:$0xff] %vm475, %v660
        %669 = vst.msk [vmem:[%s331 + $0x8] sm:$0xff] %vm475, %v661
        %670 = vst.msk [vmem:[%s331 + $0x10] sm:$0xff] %vm475, %v662
        %671 = vst.msk [vmem:[%s331 + $0x18] sm:$0xff] %vm475, %v663
        %672 = vst.msk [vmem:[%s331 + $0x20] sm:$0xff] %vm475, %v664
        %673 = vst.msk [vmem:[%s331 + $0x28] sm:$0xff] %vm475, %v665
        %674 = vst.msk [vmem:[%s331 + $0x30] sm:$0xff] %vm475, %v666
        %675 = vst.msk [vmem:[%s331 + $0x38] sm:$0xff] %vm475, %v667
        %v676 = vld [vmem:[%s5] sm:$0xf]
        %v678 = vsel %vm475, %v660, 0
        %v681 = vsel %vm475, %v661, 0
        %v684 = vsel %vm475, %v662, 0
        %v687 = vsel %vm475, %v663, 0
        %v690 = vsel %vm475, %v664, 0
        %v693 = vsel %vm475, %v665, 0
        %v696 = vsel %vm475, %v666, 0
        %v699 = vsel %vm475, %v667, 0
        %vm701 = vcmask 1043456
        %v703 = vsel %vm701, %v676, 0
        %705 = vmatpush.msra.mxu0 0.0
        %706 = vmatpush.msra.mxu0 0.0
        %707 = vmatpush.msra.mxu0 0.0
        %708 = vmatpush.msra.mxu0 0.0
        %709 = vmatpush.msra.mxu0 0.0
        %710 = vmatpush.msra.mxu0 0.0
        %711 = vmatpush.msra.mxu0 0.0
        %712 = vmatpush.msra.mxu0 0.0
        %713 = vmatpush.msra.mxu0 0.0
        %714 = vmatpush.msra.mxu0 0.0
        %715 = vmatpush.msra.mxu0 0.0
        %716 = vmatpush.msra.mxu0 0.0
        %717 = vmatpush.msra.mxu0 0.0
        %718 = vmatpush.msra.mxu0 0.0
        %719 = vmatpush.msra.mxu0 0.0
        %720 = vmatpush.msra.mxu0 %v703
        %721 = vmatmul.f32.gmra.mxu0 %v678
        %v722 = vpop.f32.mrf.mxu0
        %v723 = vadd.f32 0.0, %v722
        %724 = vmatmul.f32.gmra.mxu0 %v681
        %v725 = vpop.f32.mrf.mxu0
        %v726 = vadd.f32 0.0, %v725
        %727 = vmatmul.f32.gmra.mxu0 %v684
        %v728 = vpop.f32.mrf.mxu0
        %v729 = vadd.f32 0.0, %v728
        %730 = vmatmul.f32.gmra.mxu0 %v687
        %v731 = vpop.f32.mrf.mxu0
        %v732 = vadd.f32 0.0, %v731
        %733 = vmatmul.f32.gmra.mxu0 %v690
        %v734 = vpop.f32.mrf.mxu0
        %v735 = vadd.f32 0.0, %v734
        %736 = vmatmul.f32.gmra.mxu0 %v693
        %v737 = vpop.f32.mrf.mxu0
        %v738 = vadd.f32 0.0, %v737
        %739 = vmatmul.f32.gmra.mxu0 %v696
        %v740 = vpop.f32.mrf.mxu0
        %v741 = vadd.f32 0.0, %v740
        %742 = vmatmul.f32.gmra.mxu0 %v699
        %v743 = vpop.f32.mrf.mxu0
        %v744 = vadd.f32 0.0, %v743
        %745 = vdwg.mxu0
        %v746 = vmul.f32 %v723, %v339
        %v747 = vmul.f32 %v726, %v340
        %v748 = vmul.f32 %v729, %v341
        %v749 = vmul.f32 %v732, %v342
        %v750 = vmul.f32 %v735, %v343
        %v751 = vmul.f32 %v738, %v344
        %v752 = vmul.f32 %v741, %v345
        %v753 = vmul.f32 %v744, %v346
        %v754 = vld [vmem:[%s6] sm:$0xff]
        %v755 = vld [vmem:[%s6 + $0x8] sm:$0xff]
        %v756 = vld [vmem:[%s6 + $0x10] sm:$0xff]
        %v757 = vld [vmem:[%s6 + $0x18] sm:$0xff]
        %v758 = vld [vmem:[%s6 + $0x20] sm:$0xff]
        %v759 = vld [vmem:[%s6 + $0x28] sm:$0xff]
        %v760 = vld [vmem:[%s6 + $0x30] sm:$0xff]
        %v761 = vld [vmem:[%s6 + $0x38] sm:$0xff]
        %v762 = vld [vmem:[%s6 + $0x40] sm:$0xff]
        %v763 = vld [vmem:[%s6 + $0x48] sm:$0xff]
        %v764 = vld [vmem:[%s6 + $0x50] sm:$0xff]
        %v765 = vld [vmem:[%s6 + $0x58] sm:$0xff]
        %v766 = vld [vmem:[%s6 + $0x60] sm:$0xff]
        %v767 = vld [vmem:[%s6 + $0x68] sm:$0xff]
        %v768 = vld [vmem:[%s6 + $0x70] sm:$0xff]
        %v769 = vld [vmem:[%s6 + $0x78] sm:$0xff]
        %770 = vmatpush.msra.mxu0 %v769
        %771 = vmatpush.msra.mxu0 %v768
        %772 = vmatpush.msra.mxu0 %v767
        %773 = vmatpush.msra.mxu0 %v766
        %774 = vmatpush.msra.mxu0 %v765
        %775 = vmatpush.msra.mxu0 %v764
        %776 = vmatpush.msra.mxu0 %v763
        %777 = vmatpush.msra.mxu0 %v762
        %778 = vmatpush.msra.mxu0 %v761
        %779 = vmatpush.msra.mxu0 %v760
        %780 = vmatpush.msra.mxu0 %v759
        %781 = vmatpush.msra.mxu0 %v758
        %782 = vmatpush.msra.mxu0 %v757
        %783 = vmatpush.msra.mxu0 %v756
        %784 = vmatpush.msra.mxu0 %v755
        %785 = vmatpush.msra.mxu0 %v754
        %786 = vmatmul.f32.gmra.mxu0 %v746
        %v787 = vpop.f32.mrf.mxu0
        %v788 = vadd.f32 0.0, %v787
        %789 = vmatmul.f32.gmra.mxu0 %v747
        %v790 = vpop.f32.mrf.mxu0
        %v791 = vadd.f32 0.0, %v790
        %792 = vmatmul.f32.gmra.mxu0 %v748
        %v793 = vpop.f32.mrf.mxu0
        %v794 = vadd.f32 0.0, %v793
        %795 = vmatmul.f32.gmra.mxu0 %v749
        %v796 = vpop.f32.mrf.mxu0
        %v797 = vadd.f32 0.0, %v796
        %798 = vmatmul.f32.gmra.mxu0 %v750
        %v799 = vpop.f32.mrf.mxu0
        %v800 = vadd.f32 0.0, %v799
        %801 = vmatmul.f32.gmra.mxu0 %v751
        %v802 = vpop.f32.mrf.mxu0
        %v803 = vadd.f32 0.0, %v802
        %804 = vmatmul.f32.gmra.mxu0 %v752
        %v805 = vpop.f32.mrf.mxu0
        %v806 = vadd.f32 0.0, %v805
        %807 = vmatmul.f32.gmra.mxu0 %v753
        %v808 = vpop.f32.mrf.mxu0
        %v809 = vadd.f32 0.0, %v808
        %810 = vdwg.mxu0
        %vm811 = vcmask 261120
        %812 = vst.msk [vmem:[%s337] sm:$0xff] %vm811, %v788
        %813 = vst.msk [vmem:[%s337 + $0x8] sm:$0xff] %vm811, %v791
        %814 = vst.msk [vmem:[%s337 + $0x10] sm:$0xff] %vm811, %v794
        %815 = vst.msk [vmem:[%s337 + $0x18] sm:$0xff] %vm811, %v797
        %816 = vst.msk [vmem:[%s337 + $0x20] sm:$0xff] %vm811, %v800
        %817 = vst.msk [vmem:[%s337 + $0x28] sm:$0xff] %vm811, %v803
        %818 = vst.msk [vmem:[%s337 + $0x30] sm:$0xff] %vm811, %v806
        %819 = vst.msk [vmem:[%s337 + $0x38] sm:$0xff] %vm811, %v809
        %s820 = smul.u32 8, %s22
        %p821 = scmp.lt.s32.totalorder %s820, 15
        %s822 = scalar_select %p821, %s820, 15
        %s823 = smul.addr %s822, 8
        %s824 = scalar_lea.vmem %s7, %s823
        %s825 = smul.u32 8, %s22
        %p826 = scmp.lt.s32.totalorder %s825, 15
        %s827 = scalar_select %p826, %s825, 15
        %s828 = smul.addr %s827, 8
        %s829 = scalar_lea.vmem %s8, %s828
        // Predicated region
        $region53: #{tpu_custom_call.1} parent=47 // pred_check
          %p830 = pneg %p192
        $region54: #{tpu_custom_call.1} parent=47 // pred_check_branch
          %832 = sbr.rel (%p830) target = $region56
        $region55: #{tpu_custom_call.1} parent=47 // pred_region
          %s833 = smul.u32 8, %s22
        $region56: #{tpu_custom_call.1} parent=47 // pred_fallthru
          _
        // Predicated region
        $region57: #{tpu_custom_call.1} parent=47 // pred_check
          %p834 = pneg %p218
        $region58: #{tpu_custom_call.1} parent=47 // pred_check_branch
          %836 = sbr.rel (%p834) target = $region60
        $region59: #{tpu_custom_call.1} parent=47 // pred_region
          %s837 = smul.u32 8, %s22
        $region60: #{tpu_custom_call.1} parent=47 // pred_fallthru
          _
      $region48: #{tpu_custom_call.1} parent=5 // pred_fallthru
        _
      %p838 = scmp.le.s32.totalorder 2, %s17
      // Predicated region
      $region61: #{tpu_custom_call.1} parent=5 // pred_check
        %p839 = pneg %p838
      $region62: #{tpu_custom_call.1} parent=5 // pred_check_branch
        %841 = sbr.rel (%p839) target = $region64
      $region63: #{tpu_custom_call.1} parent=5 // pred_region
        %s842 = ssub.s32 %s17, 2
        // Predicated region
        $region65: #{tpu_custom_call.1} parent=63 // pred_check
          %p843 = pneg %p198
        $region66: #{tpu_custom_call.1} parent=63 // pred_check_branch
          %845 = sbr.rel (%p843) target = $region68
        $region67: #{tpu_custom_call.1} parent=63 // pred_region
          %s846 = smul.u32 8, %s23
          %p847 = scmp.lt.s32.totalorder %s846, 15
          %s848 = scalar_select %p847, %s846, 15
          %s849 = smul.addr %s848, 8
          %s850 = scalar_lea.vmem %s7, %s849
        $region68: #{tpu_custom_call.1} parent=63 // pred_fallthru
          _
        // Predicated region
        $region69: #{tpu_custom_call.1} parent=63 // pred_check
          %p851 = pneg %p224
        $region70: #{tpu_custom_call.1} parent=63 // pred_check_branch
          %853 = sbr.rel (%p851) target = $region72
        $region71: #{tpu_custom_call.1} parent=63 // pred_region
          %s854 = smul.u32 8, %s23
          %p855 = scmp.lt.s32.totalorder %s854, 15
          %s856 = scalar_select %p855, %s854, 15
          %s857 = smul.addr %s856, 8
          %s858 = scalar_lea.vmem %s8, %s857
        $region72: #{tpu_custom_call.1} parent=63 // pred_fallthru
          _
      $region64: #{tpu_custom_call.1} parent=5 // pred_fallthru
        _
    $region6: #{tpu_custom_call.1} parent=1 // loop_footer
      %s21 = sadd.s32 1, %s17
    $region7: #{tpu_custom_call.1} parent=1 // loop_footer_branch
      %16 = sbr.rel target = $region3
    $region8: #{tpu_custom_call.1} parent=1 // loop_exit
      _
    %859 = vsyncpa [#allocation4], 1
    %s860 = scalar_lea.sflag [#allocation4], 1
    %861 = vsyncpa %s860, 1

</llo_original>
